<compile_context>
chip_gen: v7x
topology: tpu7x:2x2x1
jax: 0.10.0
libtpu: 0.0.40
codegen_flags: <defaults>
</compile_context>

<pallas_src>
import functools

import jax
import jax.numpy as jnp
from jax.experimental import pallas as pl
from jax.experimental.pallas import tpu as pltpu


def _p_or_q_kernel(i_ref, q_ref, r_ref, o_ref, *, gamma):
    # Upcast to f32 for the math (kernel is HBM-bound, so this is free and
    # keeps bf16/int inputs accurate); cast back only on the store.
    I = i_ref[...].astype(jnp.float32)
    Q = q_ref[...].astype(jnp.float32)
    R = r_ref[...].astype(jnp.float32)
    num = I * Q + gamma * R
    den = gamma + Q * Q
    # Exact reciprocal rides the EUP slot; the multiply stays on the VALU slot.
    o_ref[...] = (num * pl.reciprocal(den, approx=False)).astype(o_ref.dtype)


def _round_up(x, m):
    return ((x + m - 1) // m) * m


def p_or_q(I, Q, R, gamma, *, min_kernel_elems=1 << 20):
    """Closed-form least-squares update: (I*Q + gamma*R) / (gamma + Q*Q)."""
    assert I.shape == Q.shape == R.shape
    assert I.dtype == Q.dtype == R.dtype

    orig_shape = I.shape
    dtype = I.dtype
    total = I.size
    lanes = 128
    itemsize = jnp.dtype(dtype).itemsize
    # Packed-sublane granularity: 8 rows for 4-byte, 16 for 2-byte, 32 for 1-byte.
    sub = max(8, 32 // itemsize)

    # gamma is a fixed hyperparameter in this module -> compile-time constant.
    # (Each distinct gamma retraces; pass as an SMEM scalar if it varies often.)
    gamma = float(gamma)

    def dense_ref(i, q, r):
        return ((i * q + gamma * r) / (gamma + q * q)).astype(dtype)

    # Only full 128-lane rows go through the kernel; the (<128 element) ragged
    # tail, if any, is computed with plain jnp -- no pad-and-copy of the full
    # tensors (the old path added an extra HBM read+write pass per operand).
    aligned = (total // lanes) * lanes
    tail = total - aligned

    # Small / degenerate tensors: a fused XLA elementwise beats a pallas_call
    # launch at these sizes.
    if total < min_kernel_elems or aligned < sub * lanes:
        return dense_ref(I, Q, R)

    rows = aligned // lanes

    def slab(x):
        # Common case (tail == 0): pure metadata reshape, zero extra traffic.
        return x.reshape(-1)[:aligned].reshape(rows, lanes)

    If, Qf, Rf = slab(I), slab(Q), slab(R)

    # ~2 MiB per operand block (4096 rows f32 / 8192 rows bf16).
    block_rows = _round_up((2 << 20) // (lanes * itemsize), sub)
    # Keep >= ~4 grid steps when the tensor allows it (megacore load balance).
    target_rows = _round_up(pl.cdiv(rows, 4), sub)
    tile_rows = max(sub, min(block_rows, target_rows))

    # Ragged grid: last block may extend past `rows`. OOB reads give harmless
    # elementwise garbage (no traps on TPU), OOB writes are dropped.
    grid = (pl.cdiv(rows, tile_rows),)
    spec = pl.BlockSpec((tile_rows, lanes), lambda i: (i, 0))

    out_slab = pl.pallas_call(
        functools.partial(_p_or_q_kernel, gamma=gamma),
        out_shape=jax.ShapeDtypeStruct((rows, lanes), dtype),
        grid=grid,
        in_specs=[spec, spec, spec],
        out_specs=spec,
        compiler_params=pltpu.CompilerParams(
            # Parallel axis lets v7x's two TensorCores split the rows;
            # neutral on single-core v5e/v6e.
            dimension_semantics=("parallel",),
            vmem_limit_bytes=32 * 1024 * 1024),
        cost_estimate=pl.CostEstimate(
            flops=6 * aligned,
            transcendentals=aligned,
            bytes_accessed=4 * aligned * itemsize),
    )(If, Qf, Rf)

    out_flat = out_slab.reshape(-1)
    if tail:
        It = I.reshape(-1)[aligned:]
        Qt = Q.reshape(-1)[aligned:]
        Rt = R.reshape(-1)[aligned:]
        out_flat = jnp.concatenate([out_flat, dense_ref(It, Qt, Rt)])
    return out_flat.reshape(orig_shape)


if __name__ == "__main__":
    key = jax.random.PRNGKey(0)
    gamma = 0.5

    def reference(i, q, r):
        return (i * q + gamma * r) / (gamma + q * q)

    def make(shape, k):
        k1, k2, k3 = jax.random.split(k, 3)
        I = jax.random.uniform(k1, shape, dtype=jnp.float32)
        Q = jax.random.uniform(k2, shape, dtype=jnp.float32) + 0.1
        R = jax.random.uniform(k3, shape, dtype=jnp.float32)
        return I, Q, R

    # Force the Pallas kernel path even at self-test sizes.
    run_kernel = jax.jit(lambda i, q, r: p_or_q(i, q, r, gamma, min_kernel_elems=0))
    # Default dispatch (small tensors take the fused-XLA fast path).
    run_default = jax.jit(lambda i, q, r: p_or_q(i, q, r, gamma))

    k1, k2 = jax.random.split(key)

    # 1) Small NCHW shape from the image-decomposition module; lane-aligned
    #    (2*4*16*16 = 2048 elements = 16 rows of 128), 2 grid blocks.
    I, Q, R = make((2, 4, 16, 16), k1)
    out = jax.block_until_ready(run_kernel(I, Q, R))
    assert out.shape == I.shape
    assert jnp.allclose(out, reference(I, Q, R), atol=1e-6, rtol=1e-5)

    # 2) Misaligned shape (2*4*15*11 = 1320 elements): exercises both the
    #    ragged last grid block (10 rows, tile of 8) and the <128-element tail.
    I2, Q2, R2 = make((2, 4, 15, 11), k2)
    out2 = jax.block_until_ready(run_kernel(I2, Q2, R2))
    assert out2.shape == I2.shape
    assert jnp.allclose(out2, reference(I2, Q2, R2), atol=1e-6, rtol=1e-5)

    # 3) Default dispatch on the small tensor (fast path, no pallas_call).
    out3 = jax.block_until_ready(run_default(I, Q, R))
    assert jnp.allclose(out3, reference(I, Q, R), atol=1e-6, rtol=1e-5)

    print("KERNEL_OK")
</pallas_src>

<mosaic_0001>
module attributes {stable_mosaic.version = 11 : i64} {
  func.func @_p_or_q_kernel(%arg0: i32, %arg1: memref<8x128xf32, #tpu.memory_space<vmem>>, %arg2: memref<8x128xf32, #tpu.memory_space<vmem>>, %arg3: memref<8x128xf32, #tpu.memory_space<vmem>>, %arg4: memref<8x128xf32, #tpu.memory_space<vmem>>) attributes {dimension_semantics = [#tpu.dimension_semantics<parallel>], iteration_bounds = array<i64: 2>, scalar_prefetch = 0 : i64, scratch_operands = 0 : i64, tpu.core_type = #tpu.core_type<tc>, window_params = [{transform_indices = @transform_0, window_bounds = array<i64: 8, 128>}, {transform_indices = @transform_1, window_bounds = array<i64: 8, 128>}, {transform_indices = @transform_2, window_bounds = array<i64: 8, 128>}, {transform_indices = @transform_3, window_bounds = array<i64: 8, 128>}]} {
    %c0 = arith.constant 0 : index
    %c0_0 = arith.constant 0 : index
    %0 = vector.load %arg1[%c0, %c0_0] : memref<8x128xf32, #tpu.memory_space<vmem>>, vector<8x128xf32>
    %c0_1 = arith.constant 0 : index
    %c0_2 = arith.constant 0 : index
    %1 = vector.load %arg2[%c0_1, %c0_2] : memref<8x128xf32, #tpu.memory_space<vmem>>, vector<8x128xf32>
    %c0_3 = arith.constant 0 : index
    %c0_4 = arith.constant 0 : index
    %2 = vector.load %arg3[%c0_3, %c0_4] : memref<8x128xf32, #tpu.memory_space<vmem>>, vector<8x128xf32>
    %3 = arith.mulf %0, %1 : vector<8x128xf32>
    %cst = arith.constant 5.000000e-01 : f32
    %4 = vector.broadcast %cst : f32 to vector<8x128xf32>
    %5 = arith.mulf %4, %2 : vector<8x128xf32>
    %6 = arith.addf %3, %5 : vector<8x128xf32>
    %7 = arith.mulf %1, %1 : vector<8x128xf32>
    %cst_5 = arith.constant 5.000000e-01 : f32
    %8 = vector.broadcast %cst_5 : f32 to vector<8x128xf32>
    %9 = arith.addf %8, %7 : vector<8x128xf32>
    %10 = tpu.reciprocal %9 : vector<8x128xf32> -> vector<8x128xf32>
    %11 = arith.mulf %6, %10 : vector<8x128xf32>
    %c0_6 = arith.constant 0 : index
    %c0_7 = arith.constant 0 : index
    %12 = vector.load %arg4[%c0_6, %c0_7] : memref<8x128xf32, #tpu.memory_space<vmem>>, vector<8x128xf32>
    tpu.vector_store %arg4[%c0_6, %c0_7], %11 {strides = array<i32>} : memref<8x128xf32, #tpu.memory_space<vmem>>, vector<8x128xf32>,
    return
  }
  func.func @transform_0(%arg0: i32) -> (i32, i32) {
    %c0_i32 = arith.constant 0 : i32
    %c0_i32_0 = arith.constant 0 : i32
    return %arg0, %c0_i32 : i32, i32
  }
  func.func @transform_1(%arg0: i32) -> (i32, i32) {
    %c0_i32 = arith.constant 0 : i32
    %c0_i32_0 = arith.constant 0 : i32
    return %arg0, %c0_i32 : i32, i32
  }
  func.func @transform_2(%arg0: i32) -> (i32, i32) {
    %c0_i32 = arith.constant 0 : i32
    %c0_i32_0 = arith.constant 0 : i32
    return %arg0, %c0_i32 : i32, i32
  }
  func.func @transform_3(%arg0: i32) -> (i32, i32) {
    %c0_i32 = arith.constant 0 : i32
    %c0_i32_0 = arith.constant 0 : i32
    return %arg0, %c0_i32 : i32, i32
  }
}

</mosaic_0001>

<llo_original>
// kernel: _lambda_.1
$region0: #{_lambda_.1}
  #allocation0 [shape = 'u32[]', space=smem, size = 0x4, offset = 0x4, fixed_abs, tag = 'smem constant byte address 0x4 - core index']
  #allocation1 [shape = 'u32[144,128]{1,0:T(1,128)}', space=vmem, size = 0x12000, scoped, tag = 'internal scratch']
  %s0 = inlined_call_operand.vmem [shape: f32[16,128], index: 0, kind: input, shape index: {}]
  %s1 = inlined_call_operand.vmem [shape: f32[16,128], index: 1, kind: input, shape index: {}]
  %s2 = inlined_call_operand.vmem [shape: f32[16,128], index: 2, kind: input, shape index: {}]
  %s3 = inlined_call_operand.vmem [shape: f32[16,128], index: 3, kind: output, shape index: {}]
  %s4 = sld [smem:[#allocation0]]
  $region45: #{_lambda_.1} parent=0
    _
  %s6 = ssub.s32 1, %s4
  %s7 = scalar_select 0, %s6, %s4
  loop: start=0, step=1, limit=4
  $region2: #{_lambda_.1} parent=0 // loop_pre_header
    _
  $region3: #{_lambda_.1} parent=0 // loop_header
    %s9 = sphi 0, %s13
    %p10 = scmp.ge.s32.totalorder %s9, 4
    %s19 = sphi 0, %s21
    %s22 = sphi 0, %s19
    %s23 = sphi 0, %s22
    %s39 = sphi 0, %s23
    %s45 = sphi 0, %s47
    %s48 = sphi 0, %s45
    %s49 = sphi 0, %s48
    %s65 = sphi 0, %s49
    %s71 = sphi 0, %s73
    %s74 = sphi 0, %s71
    %s75 = sphi 0, %s74
    %s91 = sphi 0, %s75
    %s97 = sphi 0, %s99
    %s100 = sphi 0, %s97
    %s101 = sphi 0, %s100
    %s117 = sphi 0, %s101
  $region4: #{_lambda_.1} parent=0 // loop_header_branch
    %12 = sbr.rel (%p10) target = $region8
  $region5: #{_lambda_.1} parent=0 // loop_body
    %s14 = ssub.s32 %s9, 1
    %s15 = ssub.s32 %s9, 2
    %s16 = sadd.s32 %s9, 1
    %s17 = ssub.s32 %s9, %s16
    %p18 = scmp.eq.s32.totalorder %s17, 0
    %s20 = sadd.s32 %s19, 1
    %s21 = scalar_select %p18, %s19, %s20
    %p24 = pneg %p18
    %p25 = scmp.eq.s32.totalorder %s9, 1
    %p26 = por %p24, %p25
    %p27 = scmp.ne.s32.totalorder %s19, %s22
    %p28 = scmp.eq.s32.totalorder %s9, 0
    %p29 = por %p27, %p28
    %p30 = scmp.ne.s32.totalorder %s19, %s22
    %p31 = scmp.eq.s32.totalorder %s14, 1
    %p32 = por %p30, %p31
    %p33 = scmp.ne.s32.totalorder %s22, %s23
    %p34 = scmp.eq.s32.totalorder %s14, 0
    %p35 = por %p33, %p34
    %p36 = scmp.ne.s32.totalorder %s22, %s23
    %p37 = scmp.eq.s32.totalorder %s15, 1
    %p38 = por %p36, %p37
    %p40 = scmp.ne.s32.totalorder %s23, %s39
    %p41 = scmp.eq.s32.totalorder %s15, 0
    %p42 = por %p40, %p41
    %s43 = ssub.s32 %s9, %s16
    %p44 = scmp.eq.s32.totalorder %s43, 0
    %s46 = sadd.s32 %s45, 1
    %s47 = scalar_select %p44, %s45, %s46
    %p50 = pneg %p44
    %p51 = scmp.eq.s32.totalorder %s9, 1
    %p52 = por %p50, %p51
    %p53 = scmp.ne.s32.totalorder %s45, %s48
    %p54 = scmp.eq.s32.totalorder %s9, 0
    %p55 = por %p53, %p54
    %p56 = scmp.ne.s32.totalorder %s45, %s48
    %p57 = scmp.eq.s32.totalorder %s14, 1
    %p58 = por %p56, %p57
    %p59 = scmp.ne.s32.totalorder %s48, %s49
    %p60 = scmp.eq.s32.totalorder %s14, 0
    %p61 = por %p59, %p60
    %p62 = scmp.ne.s32.totalorder %s48, %s49
    %p63 = scmp.eq.s32.totalorder %s15, 1
    %p64 = por %p62, %p63
    %p66 = scmp.ne.s32.totalorder %s49, %s65
    %p67 = scmp.eq.s32.totalorder %s15, 0
    %p68 = por %p66, %p67
    %s69 = ssub.s32 %s9, %s16
    %p70 = scmp.eq.s32.totalorder %s69, 0
    %s72 = sadd.s32 %s71, 1
    %s73 = scalar_select %p70, %s71, %s72
    %p76 = pneg %p70
    %p77 = scmp.eq.s32.totalorder %s9, 1
    %p78 = por %p76, %p77
    %p79 = scmp.ne.s32.totalorder %s71, %s74
    %p80 = scmp.eq.s32.totalorder %s9, 0
    %p81 = por %p79, %p80
    %p82 = scmp.ne.s32.totalorder %s71, %s74
    %p83 = scmp.eq.s32.totalorder %s14, 1
    %p84 = por %p82, %p83
    %p85 = scmp.ne.s32.totalorder %s74, %s75
    %p86 = scmp.eq.s32.totalorder %s14, 0
    %p87 = por %p85, %p86
    %p88 = scmp.ne.s32.totalorder %s74, %s75
    %p89 = scmp.eq.s32.totalorder %s15, 1
    %p90 = por %p88, %p89
    %p92 = scmp.ne.s32.totalorder %s75, %s91
    %p93 = scmp.eq.s32.totalorder %s15, 0
    %p94 = por %p92, %p93
    %s95 = ssub.s32 %s9, %s16
    %p96 = scmp.eq.s32.totalorder %s95, 0
    %s98 = sadd.s32 %s97, 1
    %s99 = scalar_select %p96, %s97, %s98
    %p102 = pneg %p96
    %p103 = scmp.eq.s32.totalorder %s9, 1
    %p104 = por %p102, %p103
    %p105 = scmp.ne.s32.totalorder %s97, %s100
    %p106 = scmp.eq.s32.totalorder %s9, 0
    %p107 = por %p105, %p106
    %p108 = scmp.ne.s32.totalorder %s97, %s100
    %p109 = scmp.eq.s32.totalorder %s14, 1
    %p110 = por %p108, %p109
    %p111 = scmp.ne.s32.totalorder %s100, %s101
    %p112 = scmp.eq.s32.totalorder %s14, 0
    %p113 = por %p111, %p112
    %p114 = scmp.ne.s32.totalorder %s100, %s101
    %p115 = scmp.eq.s32.totalorder %s15, 1
    %p116 = por %p114, %p115
    %p118 = scmp.ne.s32.totalorder %s101, %s117
    %p119 = scmp.eq.s32.totalorder %s15, 0
    %p120 = por %p118, %p119
    %p121 = scmp.le.s32.totalorder 1, %s9
    %p122 = scmp.lt.s32.totalorder %s9, 3
    %p123 = pnand %p121, %p122
    %p124 = pneg %p123
    // Predicated region
    $region9: #{_lambda_.1} parent=5 // pred_check
      _
    $region10: #{_lambda_.1} parent=5 // pred_check_branch
      %126 = sbr.rel (%p123) target = $region12
    $region11: #{_lambda_.1} parent=5 // pred_region
      %s127 = ssub.s32 %s9, 1
    $region12: #{_lambda_.1} parent=5 // pred_fallthru
      _
    %p128 = scmp.lt.s32.totalorder %s9, 2
    // Predicated region
    $region13: #{_lambda_.1} parent=5 // pred_check
      %p129 = pneg %p128
    $region14: #{_lambda_.1} parent=5 // pred_check_branch
      %131 = sbr.rel (%p129) target = $region16
    $region15: #{_lambda_.1} parent=5 // pred_region
      // Predicated region
      $region17: #{_lambda_.1} parent=15 // pred_check
        %p132 = pneg %p29
      $region18: #{_lambda_.1} parent=15 // pred_check_branch
        %134 = sbr.rel (%p132) target = $region20
      $region19: #{_lambda_.1} parent=15 // pred_region
        %p135 = scmp.lt.s32.totalorder %s9, 1
        %s136 = scalar_select %p135, %s9, 1
        %s137 = smul.addr %s136, 8
        %s138 = scalar_lea.vmem %s0, %s137
      $region20: #{_lambda_.1} parent=15 // pred_fallthru
        _
      // Predicated region
      $region21: #{_lambda_.1} parent=15 // pred_check
        %p139 = pneg %p55
      $region22: #{_lambda_.1} parent=15 // pred_check_branch
        %141 = sbr.rel (%p139) target = $region24
      $region23: #{_lambda_.1} parent=15 // pred_region
        %p142 = scmp.lt.s32.totalorder %s9, 1
        %s143 = scalar_select %p142, %s9, 1
        %s144 = smul.addr %s143, 8
        %s145 = scalar_lea.vmem %s1, %s144
      $region24: #{_lambda_.1} parent=15 // pred_fallthru
        _
      // Predicated region
      $region25: #{_lambda_.1} parent=15 // pred_check
        %p146 = pneg %p81
      $region26: #{_lambda_.1} parent=15 // pred_check_branch
        %148 = sbr.rel (%p146) target = $region28
      $region27: #{_lambda_.1} parent=15 // pred_region
        %p149 = scmp.lt.s32.totalorder %s9, 1
        %s150 = scalar_select %p149, %s9, 1
        %s151 = smul.addr %s150, 8
        %s152 = scalar_lea.vmem %s2, %s151
      $region28: #{_lambda_.1} parent=15 // pred_fallthru
        _
    $region16: #{_lambda_.1} parent=5 // pred_fallthru
      _
    %p153 = scmp.le.s32.totalorder 1, %s9
    %p154 = scmp.lt.s32.totalorder %s9, 3
    %p155 = pnand %p153, %p154
    %p156 = pneg %p155
    // Predicated region
    $region29: #{_lambda_.1} parent=5 // pred_check
      _
    $region30: #{_lambda_.1} parent=5 // pred_check_branch
      %158 = sbr.rel (%p155) target = $region32
    $region31: #{_lambda_.1} parent=5 // pred_region
      %s159 = ssub.s32 %s9, 1
      %p160 = scmp.lt.s32.totalorder %s14, 1
      %s161 = scalar_select %p160, %s14, 1
      %s162 = smul.addr %s161, 8
      %s163 = scalar_lea.vmem %s0, %s162
      %p164 = pneg %p35
      %p165 = pneg %p32
      %p166 = scmp.lt.s32.totalorder %s14, 1
      %s167 = scalar_select %p166, %s14, 1
      %s168 = smul.addr %s167, 8
      %s169 = scalar_lea.vmem %s1, %s168
      %p170 = pneg %p61
      %p171 = pneg %p58
      %p172 = scmp.lt.s32.totalorder %s14, 1
      %s173 = scalar_select %p172, %s14, 1
      %s174 = smul.addr %s173, 8
      %s175 = scalar_lea.vmem %s2, %s174
      %p176 = pneg %p87
      %p177 = pneg %p84
      %p178 = pneg %p113
      %p179 = pneg %p110
      %p180 = scmp.lt.s32.totalorder %s14, 1
      %s181 = scalar_select %p180, %s14, 1
      %s182 = smul.addr %s181, 8
      %s183 = scalar_lea.vmem %s3, %s182
      %p184 = scmp.lt.s32.totalorder %s14, 1
      %s185 = scalar_select %p184, %s14, 1
      %s186 = smul.addr %s185, 8
      %s187 = scalar_lea.vmem %s0, %s186
      %p188 = scmp.lt.s32.totalorder %s14, 1
      %s189 = scalar_select %p188, %s14, 1
      %s190 = smul.addr %s189, 8
      %s191 = scalar_lea.vmem %s1, %s190
      %p192 = scmp.lt.s32.totalorder %s14, 1
      %s193 = scalar_select %p192, %s14, 1
      %s194 = smul.addr %s193, 8
      %s195 = scalar_lea.vmem %s2, %s194
      %p196 = scmp.lt.s32.totalorder %s14, 1
      %s197 = scalar_select %p196, %s14, 1
      %s198 = smul.addr %s197, 8
      %s199 = scalar_lea.vmem %s3, %s198
      %v200 = vld [vmem:[%s187] sm:$0xff]
      %v201 = vld [vmem:[%s191] sm:$0xff]
      %v202 = vld [vmem:[%s195] sm:$0xff]
      %v203 = vmul.f32 %v200, %v201
      %v204 = vmul.f32 %v202, 0.5
      %v205 = vadd.f32 %v203, %v204
      %v206 = vmul.f32 %v201, %v201
      %v207 = vadd.f32 %v206, 0.5
      %v208 = vrcp.pop %v207
      %v209 = vmul.f32 %v205, %v208
      %210 = vst [vmem:[%s199] sm:$0xff] %v209
      %p211 = scmp.lt.s32.totalorder %s14, 1
      %s212 = scalar_select %p211, %s14, 1
      %s213 = smul.addr %s212, 8
      %s214 = scalar_lea.vmem %s3, %s213
      // Predicated region
      $region33: #{_lambda_.1} parent=31 // pred_check
        %p215 = pneg %p110
      $region34: #{_lambda_.1} parent=31 // pred_check_branch
        %217 = sbr.rel (%p215) target = $region36
      $region35: #{_lambda_.1} parent=31 // pred_region
        _
      $region36: #{_lambda_.1} parent=31 // pred_fallthru
        _
    $region32: #{_lambda_.1} parent=5 // pred_fallthru
      _
    %p218 = scmp.le.s32.totalorder 2, %s9
    // Predicated region
    $region37: #{_lambda_.1} parent=5 // pred_check
      %p219 = pneg %p218
    $region38: #{_lambda_.1} parent=5 // pred_check_branch
      %221 = sbr.rel (%p219) target = $region40
    $region39: #{_lambda_.1} parent=5 // pred_region
      %s222 = ssub.s32 %s9, 2
      // Predicated region
      $region41: #{_lambda_.1} parent=39 // pred_check
        %p223 = pneg %p116
      $region42: #{_lambda_.1} parent=39 // pred_check_branch
        %225 = sbr.rel (%p223) target = $region44
      $region43: #{_lambda_.1} parent=39 // pred_region
        %p226 = scmp.lt.s32.totalorder %s15, 1
        %s227 = scalar_select %p226, %s15, 1
        %s228 = smul.addr %s227, 8
        %s229 = scalar_lea.vmem %s3, %s228
      $region44: #{_lambda_.1} parent=39 // pred_fallthru
        _
    $region40: #{_lambda_.1} parent=5 // pred_fallthru
      _
  $region6: #{_lambda_.1} parent=0 // loop_footer
    %s13 = sadd.s32 1, %s9
  $region7: #{_lambda_.1} parent=0 // loop_footer_branch
    %8 = sbr.rel target = $region3
  $region8: #{_lambda_.1} parent=0 // loop_exit
    _

</llo_original>
